<compile_context>
chip_gen: v5e
topology: v5e:2x2
jax: 0.10.0
libtpu: 0.0.40
codegen_flags: <defaults>
</compile_context>

<pallas_src>
import math

import jax
import jax.numpy as jnp
import numpy as np
from jax.experimental import pallas as pl
from jax.experimental.pallas import tpu as pltpu


def _build_pe_table(max_len: int, d_model: int) -> jnp.ndarray:
    """Deterministic sinusoidal PE buffer, identical to the PyTorch __init__."""
    pe = np.zeros((max_len, d_model), dtype=np.float32)
    position = np.arange(0, max_len, dtype=np.float32)[:, None]
    div_term = np.exp(
        np.arange(0, d_model, 2, dtype=np.float32) * (-math.log(10000.0) / d_model)
    )
    pe[:, 0::2] = np.sin(position * div_term)
    pe[:, 1::2] = np.cos(position * div_term)
    return jnp.asarray(pe)  # (max_len, d_model)


def _band_pe_kernel(x_ref, wpe_ref, o_ref):
    # x_ref  : (BS, B, D)  input tile
    # wpe_ref: (BS, 1, D)  pre-weighted f32 PE rows (broadcast over batch axis)
    # o_ref  : (BS, B, D)
    o_ref[...] = (x_ref[...].astype(jnp.float32) + wpe_ref[...]).astype(o_ref.dtype)


def _tpu_generation_params():
    """(block_budget_bytes, vmem_limit_bytes, max_rows, split_even_grid).

    v5e / v6e: 128 MiB physical VMEM, single TensorCore -> big blocks, no
    forced grid splitting (splitting is pure per-step overhead there).
    v7x (or unknown chip): 64 MiB VMEM per TC, 2 TensorCores -> cap the block
    budget at ~20 MiB and split into an even, balanced grid so both cores
    stream concurrently under dimension_semantics=("parallel",).
    """
    try:
        kind = jax.devices()[0].device_kind.lower()
    except Exception:
        kind = ""
    if any(tag in kind for tag in ("v5 lite", "v5e", "v6")):
        return 40 << 20, 64 << 20, 8192, False
    # v7x and anything unrecognized: conservative VMEM, even 2-way grid.
    return 20 << 20, 48 << 20, 4096, True


def _choose_block_rows(seq_len: int,
                       per_row_bytes: int,
                       budget_bytes: int,
                       max_rows: int,
                       split_even: bool) -> int:
    """Largest sequence tile whose double-buffered footprint fits the budget.

    When split_even is set (multi-TensorCore chips), the grid is additionally
    balanced to an even number of roughly equal steps so neither core idles
    on a ragged tail.
    """
    fit = max(1, budget_bytes // max(int(per_row_bytes), 1))
    bs = max(1, min(int(fit), int(max_rows), int(seq_len)))
    if split_even and seq_len >= 16:
        n = -(-seq_len // bs)            # steps at the fit-limited block size
        n = max(2, n + (n % 2))          # round up to an even step count
        bs = -(-seq_len // n)            # balanced block size
        bs = min(seq_len, ((bs + 7) // 8) * 8)
    elif 8 < bs < seq_len:
        bs = (bs // 8) * 8               # tidy multiple of 8 for full blocks
    return bs


def band_positional_encoding(x: jnp.ndarray,
                             pe_table: jnp.ndarray,
                             seg_coef: jnp.ndarray,
                             *,
                             min_pallas_bytes: int = 1 << 20) -> jnp.ndarray:
    """Pallas wrapper. x: (S, B, D)."""
    S, B, D = x.shape
    n_seg = seg_coef.shape[0]
    assert D % n_seg == 0, "d_model must be divisible by number of segments"
    assert S <= pe_table.shape[0], "sequence length exceeds PE table max_len"
    seg_size = D // n_seg
    itemsize = jnp.dtype(x.dtype).itemsize

    # Glue / parameter setup (plain JAX, tiny): pre-weight the PE rows in f32
    # so the kernel only does the broadcast add.
    coef_full = jnp.repeat(seg_coef.astype(jnp.float32), seg_size)        # (D,)
    w_pe = pe_table[:S, :D].astype(jnp.float32) * coef_full[None, :]      # (S, D) f32

    if x.size * itemsize < min_pallas_bytes:
        # Tiny problem: a fused XLA broadcast add beats kernel-launch overhead
        # and the masked-lane padding a <128-wide minor dim would cause.
        return (x.astype(jnp.float32) + w_pe[:, None, :]).astype(x.dtype)

    budget, vmem_limit, max_rows, split_even = _tpu_generation_params()

    # Double-buffered per-sequence-row footprint: x block + out block (x.dtype)
    # + weighted-PE block (f32). No hidden temporaries (kernel is a bare add).
    per_row = 2 * (2 * B * D * itemsize + D * 4)
    BS = _choose_block_rows(S, per_row, budget, max_rows, split_even)
    grid = (pl.cdiv(S, BS),)

    out = pl.pallas_call(
        _band_pe_kernel,
        out_shape=jax.ShapeDtypeStruct((S, B, D), x.dtype),
        grid_spec=pl.GridSpec(
            grid=grid,
            in_specs=[
                pl.BlockSpec((BS, B, D), lambda i: (i, 0, 0)),   # x
                pl.BlockSpec((BS, 1, D), lambda i: (i, 0, 0)),   # weighted PE (f32)
            ],
            out_specs=pl.BlockSpec((BS, B, D), lambda i: (i, 0, 0)),
        ),
        compiler_params=pltpu.CompilerParams(
            dimension_semantics=("parallel",),
            vmem_limit_bytes=vmem_limit,
        ),
    )(x, w_pe.reshape(S, 1, D))
    return out


if __name__ == "__main__":
    # Small shapes consistent with the module: seq=8, batch=2, d_model=32.
    S, B, D = 8, 2, 32
    key = jax.random.PRNGKey(0)
    x = jax.random.normal(key, (S, B, D), dtype=jnp.float32)

    # Deterministic parameter / buffer initialization (matches __init__).
    pe_table = _build_pe_table(max_len=5000, d_model=D)
    seg_coef = jnp.array([2.0, 2.0, 4.0, 4.0, 8.0, 8.0, 16.0, 16.0],
                         dtype=jnp.float32)

    # Force the Pallas path (the small-problem XLA fallback would otherwise
    # catch this demo-sized input).
    out = band_positional_encoding(x, pe_table, seg_coef, min_pallas_bytes=0)
    out = jax.block_until_ready(out)

    # Pure-JAX reference check of the forward semantics (eval-mode dropout).
    seg_size = D // seg_coef.shape[0]
    ref = x + (pe_table[:S, :D] * jnp.repeat(seg_coef, seg_size)[None, :])[:, None, :]
    assert out.shape == (S, B, D)
    assert jnp.allclose(out, ref, atol=1e-5, rtol=1e-5)

    print("KERNEL_OK")
</pallas_src>

<mosaic_0001>
module attributes {stable_mosaic.version = 11 : i64} {
  func.func @_band_pe_kernel(%arg0: i32, %arg1: memref<8x2x32xf32, #tpu.memory_space<vmem>>, %arg2: memref<8x1x32xf32, #tpu.memory_space<vmem>>, %arg3: memref<8x2x32xf32, #tpu.memory_space<vmem>>) attributes {dimension_semantics = [#tpu.dimension_semantics<parallel>], iteration_bounds = array<i64: 1>, scalar_prefetch = 0 : i64, scratch_operands = 0 : i64, tpu.core_type = #tpu.core_type<tc>, window_params = [{transform_indices = @transform_0, window_bounds = array<i64: 8, 2, 32>}, {transform_indices = @transform_1, window_bounds = array<i64: 8, 1, 32>}, {transform_indices = @transform_2, window_bounds = array<i64: 8, 2, 32>}]} {
    %c0 = arith.constant 0 : index
    %c0_0 = arith.constant 0 : index
    %c0_1 = arith.constant 0 : index
    %0 = vector.load %arg1[%c0, %c0_0, %c0_1] : memref<8x2x32xf32, #tpu.memory_space<vmem>>, vector<8x2x32xf32>
    %c0_2 = arith.constant 0 : index
    %c0_3 = arith.constant 0 : index
    %c0_4 = arith.constant 0 : index
    %1 = vector.load %arg2[%c0_2, %c0_3, %c0_4] : memref<8x1x32xf32, #tpu.memory_space<vmem>>, vector<8x1x32xf32>
    %2 = vector.broadcast %1 : vector<8x1x32xf32> to vector<8x2x32xf32>
    %3 = arith.addf %0, %2 : vector<8x2x32xf32>
    %c0_5 = arith.constant 0 : index
    %c0_6 = arith.constant 0 : index
    %c0_7 = arith.constant 0 : index
    %4 = vector.load %arg3[%c0_5, %c0_6, %c0_7] : memref<8x2x32xf32, #tpu.memory_space<vmem>>, vector<8x2x32xf32>
    tpu.vector_store %arg3[%c0_5, %c0_6, %c0_7], %3 {strides = array<i32>} : memref<8x2x32xf32, #tpu.memory_space<vmem>>, vector<8x2x32xf32>,
    return
  }
  func.func @transform_0(%arg0: i32) -> (i32, i32, i32) {
    %c0_i32 = arith.constant 0 : i32
    %c0_i32_0 = arith.constant 0 : i32
    %c0_i32_1 = arith.constant 0 : i32
    return %arg0, %c0_i32, %c0_i32_0 : i32, i32, i32
  }
  func.func @transform_1(%arg0: i32) -> (i32, i32, i32) {
    %c0_i32 = arith.constant 0 : i32
    %c0_i32_0 = arith.constant 0 : i32
    %c0_i32_1 = arith.constant 0 : i32
    return %arg0, %c0_i32, %c0_i32_0 : i32, i32, i32
  }
  func.func @transform_2(%arg0: i32) -> (i32, i32, i32) {
    %c0_i32 = arith.constant 0 : i32
    %c0_i32_0 = arith.constant 0 : i32
    %c0_i32_1 = arith.constant 0 : i32
    return %arg0, %c0_i32, %c0_i32_0 : i32, i32, i32
  }
}

</mosaic_0001>

<llo_original>
// kernel: tpu_custom_call.1
$region0: #{tpu_custom_call.1}
  #allocation0 [shape = 'u32[]', space=smem, size = 0x4, offset = 0x4, fixed_abs, tag = 'smem constant byte address 0x4 - core index']
  #allocation1 [shape = 'u32[72,128]{1,0:T(1,128)}', space=vmem, size = 0x9000, scoped, tag = 'internal scratch']
  %s0 = inlined_call_operand.hbm [shape: f32[8,2,32], index: 0, kind: input, shape index: {}]
  %s1 = inlined_call_operand.hbm [shape: f32[8,1,32], index: 1, kind: input, shape index: {}]
  %s2 = inlined_call_operand.hbm [shape: f32[8,2,32], index: 2, kind: output, shape index: {}]
  %s3 = sld [smem:[#allocation0]]
  $region26: #{tpu_custom_call.1} parent=0
    _
  %s5 = ssub.s32 1, %s3
  %s6 = scalar_select 0, %s5, %s3
  $region1: #{tpu_custom_call.1} parent=0
    #allocation2 [shape = 'u8[8192]{0}', space=vmem, size = 0x2000, scoped, tag = 'input window, operand 0, single buffered']
    #allocation3 [shape = 's32[1]{0}', space=sflag, size = 0x4, scoped, tag = 'scoped memory for tpu_custom_call.1']
    #allocation4 [shape = 's32[1]{0}', space=sflag, size = 0x4, scoped, tag = 'scoped memory for tpu_custom_call.1']
    #allocation5 [shape = 'u8[4096]{0}', space=vmem, size = 0x1000, scoped, tag = 'input window, operand 1, single buffered']
    #allocation6 [shape = 's32[1]{0}', space=sflag, size = 0x4, scoped, tag = 'scoped memory for tpu_custom_call.1']
    #allocation7 [shape = 'u8[8192]{0}', space=vmem, size = 0x2000, scoped, tag = 'output window, operand 0, single buffered']
    %7 = vsyncpa [#allocation3], 0
    %8 = vsyncpa [#allocation6], 0
    %9 = vsyncpa [#allocation4], 0
    // Predicated region
    $region2: #{tpu_custom_call.1} parent=1 // pred_check
      _
    $region3: #{tpu_custom_call.1} parent=1 // pred_check_branch
      %11 = sbr.rel (0) target = $region5
    $region4: #{tpu_custom_call.1} parent=1 // pred_region
      %13 = vsyncadd [#allocation3], 0
      %s14 = sshll.u32 %s0, 4
      %s15 = int_to_ptr.hbm [resolvable:$true] %s14
      %s16 = sshll.u32 [#allocation2], 4
      %s17 = int_to_ptr.vmem [resolvable:$true] %s16
      %22 = dma.hbm_to_vmem [thread:$0]  %s15, 256, %s17, [#allocation3], 32, 32, 2
    $region5: #{tpu_custom_call.1} parent=1 // pred_fallthru
      _
    // Predicated region
    $region6: #{tpu_custom_call.1} parent=1 // pred_check
      _
    $region7: #{tpu_custom_call.1} parent=1 // pred_check_branch
      %24 = sbr.rel (0) target = $region9
    $region8: #{tpu_custom_call.1} parent=1 // pred_region
      %26 = vsyncadd [#allocation6], 0
      %s27 = sshll.u32 %s1, 4
      %s28 = int_to_ptr.hbm [resolvable:$true] %s27
      %s29 = sshll.u32 [#allocation5], 4
      %s30 = int_to_ptr.vmem [resolvable:$true] %s29
      %35 = dma.hbm_to_vmem [thread:$0]  %s28, 128, %s30, [#allocation6], 16, 16, 1
    $region9: #{tpu_custom_call.1} parent=1 // pred_fallthru
      _
    // Predicated region
    $region10: #{tpu_custom_call.1} parent=1 // pred_check
      _
    $region11: #{tpu_custom_call.1} parent=1 // pred_check_branch
      %37 = sbr.rel (0) target = $region13
    $region12: #{tpu_custom_call.1} parent=1 // pred_region
      %39 = dma.done [#allocation3], 256
    $region13: #{tpu_custom_call.1} parent=1 // pred_fallthru
      _
    // Predicated region
    $region14: #{tpu_custom_call.1} parent=1 // pred_check
      _
    $region15: #{tpu_custom_call.1} parent=1 // pred_check_branch
      %41 = sbr.rel (0) target = $region17
    $region16: #{tpu_custom_call.1} parent=1 // pred_region
      %43 = dma.done [#allocation6], 128
    $region17: #{tpu_custom_call.1} parent=1 // pred_fallthru
      _
    %v44 = vld [vmem:[#allocation2] sm:$0x3]
    %v45 = vld [vmem:[#allocation2 + $0x2] sm:$0x3]
    %v46 = vld [vmem:[#allocation2 + $0x4] sm:$0x3]
    %v47 = vld [vmem:[#allocation2 + $0x6] sm:$0x3]
    %v48 = vld [vmem:[#allocation2 + $0x8] sm:$0x3]
    %v49 = vld [vmem:[#allocation2 + $0xa] sm:$0x3]
    %v50 = vld [vmem:[#allocation2 + $0xc] sm:$0x3]
    %v51 = vld [vmem:[#allocation2 + $0xe] sm:$0x3]
    %v52 = vld [vmem:[#allocation5] sm:$0x1]
    %v53 = vld [vmem:[#allocation5 + $0x1] sm:$0x1]
    %v54 = vld [vmem:[#allocation5 + $0x2] sm:$0x1]
    %v55 = vld [vmem:[#allocation5 + $0x3] sm:$0x1]
    %v56 = vld [vmem:[#allocation5 + $0x4] sm:$0x1]
    %v57 = vld [vmem:[#allocation5 + $0x5] sm:$0x1]
    %v58 = vld [vmem:[#allocation5 + $0x6] sm:$0x1]
    %v59 = vld [vmem:[#allocation5 + $0x7] sm:$0x1]
    %v68 = vperm.slane %v52, 0
    %v69 = vperm.slane %v53, 0
    %v70 = vperm.slane %v54, 0
    %v71 = vperm.slane %v55, 0
    %v72 = vperm.slane %v56, 0
    %v73 = vperm.slane %v57, 0
    %v74 = vperm.slane %v58, 0
    %v75 = vperm.slane %v59, 0
    %v84 = vadd.f32 %v44, %v68
    %v85 = vadd.f32 %v45, %v69
    %v86 = vadd.f32 %v46, %v70
    %v87 = vadd.f32 %v47, %v71
    %v88 = vadd.f32 %v48, %v72
    %v89 = vadd.f32 %v49, %v73
    %v90 = vadd.f32 %v50, %v74
    %v91 = vadd.f32 %v51, %v75
    %vm92 = vcmask 254976
    %93 = vst.msk [vmem:[#allocation7] sm:$0x3] %vm92, %v84
    %94 = vst.msk [vmem:[#allocation7 + $0x2] sm:$0x3] %vm92, %v85
    %95 = vst.msk [vmem:[#allocation7 + $0x4] sm:$0x3] %vm92, %v86
    %96 = vst.msk [vmem:[#allocation7 + $0x6] sm:$0x3] %vm92, %v87
    %97 = vst.msk [vmem:[#allocation7 + $0x8] sm:$0x3] %vm92, %v88
    %98 = vst.msk [vmem:[#allocation7 + $0xa] sm:$0x3] %vm92, %v89
    %99 = vst.msk [vmem:[#allocation7 + $0xc] sm:$0x3] %vm92, %v90
    %100 = vst.msk [vmem:[#allocation7 + $0xe] sm:$0x3] %vm92, %v91
    // Predicated region
    $region18: #{tpu_custom_call.1} parent=1 // pred_check
      _
    $region19: #{tpu_custom_call.1} parent=1 // pred_check_branch
      %102 = sbr.rel (0) target = $region21
    $region20: #{tpu_custom_call.1} parent=1 // pred_region
      %104 = vsyncadd [#allocation4], 0
      %s105 = sshll.u32 [#allocation7], 4
      %s106 = int_to_ptr.vmem [resolvable:$true] %s105
      %s107 = sshll.u32 %s2, 4
      %s108 = int_to_ptr.hbm [resolvable:$true] %s107
      %113 = dma.vmem_to_hbm [thread:$0]  %s106, 256, %s108, [#allocation4], 32, 32, 2
    $region21: #{tpu_custom_call.1} parent=1 // pred_fallthru
      _
    // Predicated region
    $region22: #{tpu_custom_call.1} parent=1 // pred_check
      _
    $region23: #{tpu_custom_call.1} parent=1 // pred_check_branch
      %115 = sbr.rel (0) target = $region25
    $region24: #{tpu_custom_call.1} parent=1 // pred_region
      %117 = dma.done [#allocation4], 256
    $region25: #{tpu_custom_call.1} parent=1 // pred_fallthru
      _
    %118 = vsyncpa [#allocation3], 1
    %119 = vsyncpa [#allocation6], 1
    %120 = vsyncpa [#allocation4], 1

</llo_original>
